<compile_context>
chip_gen: v7x
topology: tpu7x:2x2x1
jax: 0.10.0
libtpu: 0.0.40
codegen_flags: <defaults>
</compile_context>

<pallas_src>
import jax
import jax.numpy as jnp
from jax.experimental import pallas as pl
from jax.experimental.pallas import tpu as pltpu


# Activation schedule of MLP2Layers:
# Lin+ReLU, Lin+ReLU, Lin+Tanh, Lin+ReLU, Lin+ReLU, Lin+ReLU.
_ACTS = ("relu", "relu", "tanh", "relu", "relu", "relu")


def _apply_act(name, z):
    if name == "relu":
        return jnp.maximum(z, 0.0)
    return jnp.tanh(z)


def mlp6_kernel(x_ref, w_ref, b_ref, o_ref):
    """Fused 6-layer MLP on one (tile, PAD) activation slab.

    x_ref : (tile, PAD)      f32 , zero-padded beyond the real input features
    w_ref : (6, PAD, PAD)    bf16, each layer's weight zero-padded to PAD x PAD
    b_ref : (6, 1, PAD)      f32 , each layer's bias as a (1, PAD) row
    o_ref : (tile, PAD)      f32 , real output occupies the leading out_dim lanes
    """
    n_layers = len(_ACTS)
    h = x_ref[...].astype(jnp.bfloat16)                    # cast in-kernel (VPU)
    for layer, act in enumerate(_ACTS):                    # static unroll (6)
        z = jnp.dot(h, w_ref[layer],
                    preferred_element_type=jnp.float32)    # bf16 MXU, f32 acc
        z = z + b_ref[layer]                               # (1, PAD) sublane bcast
        z = _apply_act(act, z)                             # f32 VPU / EUP
        if layer + 1 < n_layers:
            h = z.astype(jnp.bfloat16)                     # bf16 back into MXU
        else:
            o_ref[...] = z                                 # final layer: f32 store


def _round_up(n, m):
    return -(-n // m) * m


def pack_params(params, pad):
    """Pack 6 (W, b) pairs into (6, pad, pad) bf16 + (6, 1, pad) f32 slabs."""
    n = len(params)
    w_packed = jnp.zeros((n, pad, pad), jnp.bfloat16)
    b_packed = jnp.zeros((n, 1, pad), jnp.float32)
    for i, (w, b) in enumerate(params):
        fi, fo = w.shape
        w_packed = w_packed.at[i, :fi, :fo].set(w.astype(jnp.bfloat16))
        b_packed = b_packed.at[i, 0, :fo].set(b.reshape(-1).astype(jnp.float32))
    return w_packed, b_packed


def mlp2layers_forward(x, params, *, batch_tile=2048):
    """Run the fused MLP as a single Pallas TPU kernel."""
    B, f_in = x.shape
    dims = [f_in] + [w.shape[1] for w, _ in params]
    pad = _round_up(max(dims), 128)          # common lane-dense feature width
    out_dim = dims[-1]
    n_layers = len(params)

    w_packed, b_packed = pack_params(params, pad)

    # Batch tiling: 16-row multiples (bf16 sublane packing).  Small batches run
    # as a single step; B > 32 is split into >= 2 steps (v7x second TC), capped
    # at batch_tile rows per step so large batches are not per-step-overhead
    # bound.  VMEM at tile=2048: ~2-3 MB incl. double buffering — fine on all
    # generations (even v7x's 64 MiB).
    if B <= 32:
        tile = max(16, _round_up(B, 16))
    else:
        tile = min(batch_tile, _round_up(-(-B // 2), 16))
    b_pad = _round_up(B, tile)
    grid = (b_pad // tile,)

    # Pad only when needed, in f32 (the kernel does the bf16 cast), so the
    # wrapper adds at most one extra HBM pass — and zero when already aligned.
    x_in = x.astype(jnp.float32)
    if b_pad != B or pad != f_in:
        x_in = jnp.pad(x_in, ((0, b_pad - B), (0, pad - f_in)))

    out = pl.pallas_call(
        mlp6_kernel,
        out_shape=jax.ShapeDtypeStruct((b_pad, pad), jnp.float32),
        grid_spec=pltpu.PrefetchScalarGridSpec(
            num_scalar_prefetch=0,
            grid=grid,
            in_specs=[
                pl.BlockSpec((tile, pad), lambda i: (i, 0)),
                # Grid-invariant packed weights / biases (~200 KB total):
                # VMEM-resident for every grid step.
                pl.BlockSpec((n_layers, pad, pad), lambda i: (0, 0, 0)),
                pl.BlockSpec((n_layers, 1, pad), lambda i: (0, 0, 0)),
            ],
            out_specs=pl.BlockSpec((tile, pad), lambda i: (i, 0)),
        ),
        compiler_params=pltpu.CompilerParams(
            dimension_semantics=("parallel",)),
    )(x_in, w_packed, b_packed)

    # Strip batch / feature padding (output is already f32 from the kernel).
    if b_pad != B or pad != out_dim:
        out = out[:B, :out_dim]
    return out


def init_params(key, dims):
    """Deterministic init matching nn.Linear + xavier_uniform_ on weights.

    dims = [in_feature1, out_feature1, ..., out_feature6]
    Returns list of (W, b) with W shaped (fan_in, fan_out) (transposed relative
    to PyTorch's (out, in) layout).
    """
    params = []
    for layer in range(len(dims) - 1):
        fan_in, fan_out = dims[layer], dims[layer + 1]
        key, kw, kb = jax.random.split(key, 3)
        # xavier_uniform_: U(-a, a), a = sqrt(6 / (fan_in + fan_out))
        a = (6.0 / (fan_in + fan_out)) ** 0.5
        w = jax.random.uniform(kw, (fan_in, fan_out), jnp.float32, -a, a)
        # PyTorch default bias init: U(-1/sqrt(fan_in), 1/sqrt(fan_in))
        bb = 1.0 / (fan_in ** 0.5)
        b = jax.random.uniform(kb, (1, fan_out), jnp.float32, -bb, bb)
        params.append((w, b))
    return params


def mlp_reference(x, params):
    """Plain-JAX reference mirroring kernel numerics (bf16 matmul, f32 carry)."""
    h = x.astype(jnp.float32)
    for (w, b), act in zip(params, _ACTS):
        z = jnp.dot(h.astype(jnp.bfloat16), w.astype(jnp.bfloat16),
                    preferred_element_type=jnp.float32) + b.reshape(1, -1)
        h = _apply_act(act, z)
    return h


if __name__ == "__main__":
    key = jax.random.PRNGKey(0)

    # MLP2Layers(in_feature1=32, out1=64, out2=128, out3=64, out4=32, out5=64, out6=16)
    dims = [32, 64, 128, 64, 32, 64, 16]
    batch = 16

    key, kx, kp = jax.random.split(key, 3)
    x = jax.random.normal(kx, (batch, dims[0]), jnp.float32)
    params = init_params(kp, dims)

    out = mlp2layers_forward(x, params)
    out = jax.block_until_ready(out)

    ref = mlp_reference(x, params)
    assert out.shape == (batch, dims[-1])
    assert out.dtype == jnp.float32
    assert jnp.allclose(out, ref, atol=2e-2, rtol=2e-2)

    print("KERNEL_OK")
</pallas_src>

<mosaic_0001>
module attributes {stable_mosaic.version = 11 : i64} {
  func.func @mlp6_kernel(%arg0: i32, %arg1: memref<16x128xf32, #tpu.memory_space<vmem>>, %arg2: memref<6x128x128xbf16, #tpu.memory_space<vmem>>, %arg3: memref<6x1x128xf32, #tpu.memory_space<vmem>>, %arg4: memref<16x128xf32, #tpu.memory_space<vmem>>) attributes {dimension_semantics = [#tpu.dimension_semantics<parallel>], iteration_bounds = array<i64: 1>, scalar_prefetch = 0 : i64, scratch_operands = 0 : i64, tpu.core_type = #tpu.core_type<tc>, window_params = [{transform_indices = @transform_0, window_bounds = array<i64: 16, 128>}, {pipeline_mode = #tpu.pipeline_mode<synchronous>, transform_indices = @transform_1, window_bounds = array<i64: 6, 128, 128>}, {pipeline_mode = #tpu.pipeline_mode<synchronous>, transform_indices = @transform_2, window_bounds = array<i64: 6, 1, 128>}, {transform_indices = @transform_3, window_bounds = array<i64: 16, 128>}]} {
    %c0 = arith.constant 0 : index
    %c0_0 = arith.constant 0 : index
    %0 = vector.load %arg1[%c0, %c0_0] : memref<16x128xf32, #tpu.memory_space<vmem>>, vector<16x128xf32>
    %1 = arith.truncf %0 : vector<16x128xf32> to vector<16x128xbf16>
    %c0_1 = arith.constant 0 : index
    %c0_2 = arith.constant 0 : index
    %c0_3 = arith.constant 0 : index
    %2 = vector.load %arg2[%c0_1, %c0_2, %c0_3] : memref<6x128x128xbf16, #tpu.memory_space<vmem>>, vector<1x128x128xbf16>
    %3 = vector.shape_cast %2 : vector<1x128x128xbf16> to vector<128x128xbf16>
    %cst = arith.constant dense<0.000000e+00> : vector<16x128xf32>
    %4 = tpu.matmul %1, %3, %cst {dimension_numbers = #tpu.dot_dimension_numbers<[1], [0], [0], [1], [0, 0, 1, 1], [], []>} : vector<16x128xbf16>, vector<128x128xbf16>, vector<16x128xf32> -> vector<16x128xf32>
    %c0_4 = arith.constant 0 : index
    %c0_5 = arith.constant 0 : index
    %c0_6 = arith.constant 0 : index
    %5 = vector.load %arg3[%c0_4, %c0_5, %c0_6] : memref<6x1x128xf32, #tpu.memory_space<vmem>>, vector<1x1x128xf32>
    %6 = vector.shape_cast %5 : vector<1x1x128xf32> to vector<1x128xf32>
    %7 = vector.broadcast %6 : vector<1x128xf32> to vector<16x128xf32>
    %8 = arith.addf %4, %7 : vector<16x128xf32>
    %cst_7 = arith.constant 0.000000e+00 : f32
    %9 = vector.broadcast %cst_7 : f32 to vector<16x128xf32>
    %10 = arith.maximumf %8, %9 : vector<16x128xf32>
    %11 = arith.truncf %10 : vector<16x128xf32> to vector<16x128xbf16>
    %c1 = arith.constant 1 : index
    %c0_8 = arith.constant 0 : index
    %c0_9 = arith.constant 0 : index
    %12 = vector.load %arg2[%c1, %c0_8, %c0_9] : memref<6x128x128xbf16, #tpu.memory_space<vmem>>, vector<1x128x128xbf16>
    %13 = vector.shape_cast %12 : vector<1x128x128xbf16> to vector<128x128xbf16>
    %cst_10 = arith.constant dense<0.000000e+00> : vector<16x128xf32>
    %14 = tpu.matmul %11, %13, %cst_10 {dimension_numbers = #tpu.dot_dimension_numbers<[1], [0], [0], [1], [0, 0, 1, 1], [], []>} : vector<16x128xbf16>, vector<128x128xbf16>, vector<16x128xf32> -> vector<16x128xf32>
    %c1_11 = arith.constant 1 : index
    %c0_12 = arith.constant 0 : index
    %c0_13 = arith.constant 0 : index
    %15 = vector.load %arg3[%c1_11, %c0_12, %c0_13] : memref<6x1x128xf32, #tpu.memory_space<vmem>>, vector<1x1x128xf32>
    %16 = vector.shape_cast %15 : vector<1x1x128xf32> to vector<1x128xf32>
    %17 = vector.broadcast %16 : vector<1x128xf32> to vector<16x128xf32>
    %18 = arith.addf %14, %17 : vector<16x128xf32>
    %cst_14 = arith.constant 0.000000e+00 : f32
    %19 = vector.broadcast %cst_14 : f32 to vector<16x128xf32>
    %20 = arith.maximumf %18, %19 : vector<16x128xf32>
    %21 = arith.truncf %20 : vector<16x128xf32> to vector<16x128xbf16>
    %c2 = arith.constant 2 : index
    %c0_15 = arith.constant 0 : index
    %c0_16 = arith.constant 0 : index
    %22 = vector.load %arg2[%c2, %c0_15, %c0_16] : memref<6x128x128xbf16, #tpu.memory_space<vmem>>, vector<1x128x128xbf16>
    %23 = vector.shape_cast %22 : vector<1x128x128xbf16> to vector<128x128xbf16>
    %cst_17 = arith.constant dense<0.000000e+00> : vector<16x128xf32>
    %24 = tpu.matmul %21, %23, %cst_17 {dimension_numbers = #tpu.dot_dimension_numbers<[1], [0], [0], [1], [0, 0, 1, 1], [], []>} : vector<16x128xbf16>, vector<128x128xbf16>, vector<16x128xf32> -> vector<16x128xf32>
    %c2_18 = arith.constant 2 : index
    %c0_19 = arith.constant 0 : index
    %c0_20 = arith.constant 0 : index
    %25 = vector.load %arg3[%c2_18, %c0_19, %c0_20] : memref<6x1x128xf32, #tpu.memory_space<vmem>>, vector<1x1x128xf32>
    %26 = vector.shape_cast %25 : vector<1x1x128xf32> to vector<1x128xf32>
    %27 = vector.broadcast %26 : vector<1x128xf32> to vector<16x128xf32>
    %28 = arith.addf %24, %27 : vector<16x128xf32>
    %29 = math.tanh %28 : vector<16x128xf32>
    %30 = arith.truncf %29 : vector<16x128xf32> to vector<16x128xbf16>
    %c3 = arith.constant 3 : index
    %c0_21 = arith.constant 0 : index
    %c0_22 = arith.constant 0 : index
    %31 = vector.load %arg2[%c3, %c0_21, %c0_22] : memref<6x128x128xbf16, #tpu.memory_space<vmem>>, vector<1x128x128xbf16>
    %32 = vector.shape_cast %31 : vector<1x128x128xbf16> to vector<128x128xbf16>
    %cst_23 = arith.constant dense<0.000000e+00> : vector<16x128xf32>
    %33 = tpu.matmul %30, %32, %cst_23 {dimension_numbers = #tpu.dot_dimension_numbers<[1], [0], [0], [1], [0, 0, 1, 1], [], []>} : vector<16x128xbf16>, vector<128x128xbf16>, vector<16x128xf32> -> vector<16x128xf32>
    %c3_24 = arith.constant 3 : index
    %c0_25 = arith.constant 0 : index
    %c0_26 = arith.constant 0 : index
    %34 = vector.load %arg3[%c3_24, %c0_25, %c0_26] : memref<6x1x128xf32, #tpu.memory_space<vmem>>, vector<1x1x128xf32>
    %35 = vector.shape_cast %34 : vector<1x1x128xf32> to vector<1x128xf32>
    %36 = vector.broadcast %35 : vector<1x128xf32> to vector<16x128xf32>
    %37 = arith.addf %33, %36 : vector<16x128xf32>
    %cst_27 = arith.constant 0.000000e+00 : f32
    %38 = vector.broadcast %cst_27 : f32 to vector<16x128xf32>
    %39 = arith.maximumf %37, %38 : vector<16x128xf32>
    %40 = arith.truncf %39 : vector<16x128xf32> to vector<16x128xbf16>
    %c4 = arith.constant 4 : index
    %c0_28 = arith.constant 0 : index
    %c0_29 = arith.constant 0 : index
    %41 = vector.load %arg2[%c4, %c0_28, %c0_29] : memref<6x128x128xbf16, #tpu.memory_space<vmem>>, vector<1x128x128xbf16>
    %42 = vector.shape_cast %41 : vector<1x128x128xbf16> to vector<128x128xbf16>
    %cst_30 = arith.constant dense<0.000000e+00> : vector<16x128xf32>
    %43 = tpu.matmul %40, %42, %cst_30 {dimension_numbers = #tpu.dot_dimension_numbers<[1], [0], [0], [1], [0, 0, 1, 1], [], []>} : vector<16x128xbf16>, vector<128x128xbf16>, vector<16x128xf32> -> vector<16x128xf32>
    %c4_31 = arith.constant 4 : index
    %c0_32 = arith.constant 0 : index
    %c0_33 = arith.constant 0 : index
    %44 = vector.load %arg3[%c4_31, %c0_32, %c0_33] : memref<6x1x128xf32, #tpu.memory_space<vmem>>, vector<1x1x128xf32>
    %45 = vector.shape_cast %44 : vector<1x1x128xf32> to vector<1x128xf32>
    %46 = vector.broadcast %45 : vector<1x128xf32> to vector<16x128xf32>
    %47 = arith.addf %43, %46 : vector<16x128xf32>
    %cst_34 = arith.constant 0.000000e+00 : f32
    %48 = vector.broadcast %cst_34 : f32 to vector<16x128xf32>
    %49 = arith.maximumf %47, %48 : vector<16x128xf32>
    %50 = arith.truncf %49 : vector<16x128xf32> to vector<16x128xbf16>
    %c5 = arith.constant 5 : index
    %c0_35 = arith.constant 0 : index
    %c0_36 = arith.constant 0 : index
    %51 = vector.load %arg2[%c5, %c0_35, %c0_36] : memref<6x128x128xbf16, #tpu.memory_space<vmem>>, vector<1x128x128xbf16>
    %52 = vector.shape_cast %51 : vector<1x128x128xbf16> to vector<128x128xbf16>
    %cst_37 = arith.constant dense<0.000000e+00> : vector<16x128xf32>
    %53 = tpu.matmul %50, %52, %cst_37 {dimension_numbers = #tpu.dot_dimension_numbers<[1], [0], [0], [1], [0, 0, 1, 1], [], []>} : vector<16x128xbf16>, vector<128x128xbf16>, vector<16x128xf32> -> vector<16x128xf32>
    %c5_38 = arith.constant 5 : index
    %c0_39 = arith.constant 0 : index
    %c0_40 = arith.constant 0 : index
    %54 = vector.load %arg3[%c5_38, %c0_39, %c0_40] : memref<6x1x128xf32, #tpu.memory_space<vmem>>, vector<1x1x128xf32>
    %55 = vector.shape_cast %54 : vector<1x1x128xf32> to vector<1x128xf32>
    %56 = vector.broadcast %55 : vector<1x128xf32> to vector<16x128xf32>
    %57 = arith.addf %53, %56 : vector<16x128xf32>
    %cst_41 = arith.constant 0.000000e+00 : f32
    %58 = vector.broadcast %cst_41 : f32 to vector<16x128xf32>
    %59 = arith.maximumf %57, %58 : vector<16x128xf32>
    %c0_42 = arith.constant 0 : index
    %c0_43 = arith.constant 0 : index
    %60 = vector.load %arg4[%c0_42, %c0_43] : memref<16x128xf32, #tpu.memory_space<vmem>>, vector<16x128xf32>
    tpu.vector_store %arg4[%c0_42, %c0_43], %59 {strides = array<i32>} : memref<16x128xf32, #tpu.memory_space<vmem>>, vector<16x128xf32>,
    return
  }
  func.func @transform_0(%arg0: i32) -> (i32, i32) {
    %c0_i32 = arith.constant 0 : i32
    %c0_i32_0 = arith.constant 0 : i32
    return %arg0, %c0_i32 : i32, i32
  }
  func.func @transform_1(%arg0: i32) -> (i32, i32, i32) {
    %c0_i32 = arith.constant 0 : i32
    %c0_i32_0 = arith.constant 0 : i32
    %c0_i32_1 = arith.constant 0 : i32
    %c0_i32_2 = arith.constant 0 : i32
    return %c0_i32, %c0_i32_0, %c0_i32_1 : i32, i32, i32
  }
  func.func @transform_2(%arg0: i32) -> (i32, i32, i32) {
    %c0_i32 = arith.constant 0 : i32
    %c0_i32_0 = arith.constant 0 : i32
    %c0_i32_1 = arith.constant 0 : i32
    %c0_i32_2 = arith.constant 0 : i32
    return %c0_i32, %c0_i32_0, %c0_i32_1 : i32, i32, i32
  }
  func.func @transform_3(%arg0: i32) -> (i32, i32) {
    %c0_i32 = arith.constant 0 : i32
    %c0_i32_0 = arith.constant 0 : i32
    return %arg0, %c0_i32 : i32, i32
  }
}

</mosaic_0001>

<llo_original>
// kernel: tpu_custom_call.1
$region0: #{tpu_custom_call.1}
  #allocation0 [shape = 'u32[]', space=smem, size = 0x4, offset = 0x4, fixed_abs, tag = 'smem constant byte address 0x4 - core index']
  #allocation1 [shape = 'u32[144,128]{1,0:T(1,128)}', space=vmem, size = 0x12000, scoped, tag = 'internal scratch']
  %s0 = inlined_call_operand.hbm [shape: f32[16,128], index: 0, kind: input, shape index: {}]
  %s1 = inlined_call_operand.hbm [shape: bf16[6,128,128], index: 1, kind: input, shape index: {}]
  %s2 = inlined_call_operand.vmem [shape: f32[6,1,128], index: 2, kind: input, shape index: {}]
  %s3 = inlined_call_operand.hbm [shape: f32[16,128], index: 3, kind: output, shape index: {}]
  %s4 = sld [smem:[#allocation0]]
  $region30: #{tpu_custom_call.1} parent=0
    _
  %s6 = ssub.s32 1, %s4
  %s7 = scalar_select 0, %s6, %s4
  $region1: #{tpu_custom_call.1} parent=0
    #allocation2 [shape = 'u8[8192]{0}', space=vmem, size = 0x2000, scoped, tag = 'input window, operand 0, single buffered']
    #allocation3 [shape = 's32[1]{0}', space=sflag, size = 0x4, scoped, tag = 'scoped memory for tpu_custom_call.1']
    #allocation4 [shape = 's32[1]{0}', space=sflag, size = 0x4, scoped, tag = 'scoped memory for tpu_custom_call.1']
    #allocation5 [shape = 'u8[196608]{0}', space=vmem, size = 0x30000, scoped, tag = 'input window, operand 1, single buffered']
    #allocation6 [shape = 's32[1]{0}', space=sflag, size = 0x4, scoped, tag = 'scoped memory for tpu_custom_call.1']
    #allocation7 [shape = 'u8[8192]{0}', space=vmem, size = 0x2000, scoped, tag = 'output window, operand 0, single buffered']
    %8 = vsyncpa [#allocation3], 0
    %9 = vsyncpa [#allocation6], 0
    %10 = vsyncpa [#allocation4], 0
    // Predicated region
    $region2: #{tpu_custom_call.1} parent=1 // pred_check
      _
    $region3: #{tpu_custom_call.1} parent=1 // pred_check_branch
      %12 = sbr.rel (0) target = $region5
    $region4: #{tpu_custom_call.1} parent=1 // pred_region
      %s14 = ssub.s32 256, 256
      %15 = vsyncadd [#allocation3], %s14
      %s16 = sshll.u32 [#allocation2], 4
      %s17 = int_to_ptr.vmem [resolvable:$true] %s16
      %22 = dma.hbm_to_vmem [thread:$0]  %s0, 256, %s17, [#allocation3], 128, 128, 8
    $region5: #{tpu_custom_call.1} parent=1 // pred_fallthru
      _
    // Predicated region
    $region6: #{tpu_custom_call.1} parent=1 // pred_check
      _
    $region7: #{tpu_custom_call.1} parent=1 // pred_check_branch
      %24 = sbr.rel (0) target = $region9
    $region8: #{tpu_custom_call.1} parent=1 // pred_region
      %s26 = ssub.s32 6144, 6144
      %27 = vsyncadd [#allocation6], %s26
      %s28 = sshll.u32 [#allocation5], 4
      %s29 = int_to_ptr.vmem [resolvable:$true] %s28
      %34 = dma.hbm_to_vmem [thread:$0]  %s1, 6144, %s29, [#allocation6], 64, 64, 4
    $region9: #{tpu_custom_call.1} parent=1 // pred_fallthru
      _
    // Predicated region
    $region10: #{tpu_custom_call.1} parent=1 // pred_check
      _
    $region11: #{tpu_custom_call.1} parent=1 // pred_check_branch
      %36 = sbr.rel (0) target = $region13
    $region12: #{tpu_custom_call.1} parent=1 // pred_region
      _
    $region13: #{tpu_custom_call.1} parent=1 // pred_fallthru
      _
    // Predicated region
    $region14: #{tpu_custom_call.1} parent=1 // pred_check
      _
    $region15: #{tpu_custom_call.1} parent=1 // pred_check_branch
      %38 = sbr.rel (0) target = $region17
    $region16: #{tpu_custom_call.1} parent=1 // pred_region
      %39 = dma.done [#allocation3], 256
    $region17: #{tpu_custom_call.1} parent=1 // pred_fallthru
      _
    // Predicated region
    $region18: #{tpu_custom_call.1} parent=1 // pred_check
      _
    $region19: #{tpu_custom_call.1} parent=1 // pred_check_branch
      %41 = sbr.rel (0) target = $region21
    $region20: #{tpu_custom_call.1} parent=1 // pred_region
      %42 = dma.done [#allocation6], 6144
    $region21: #{tpu_custom_call.1} parent=1 // pred_fallthru
      _
    %v44 = vld [vmem:[#allocation2] sm:$0xff]
    %v45 = vld [vmem:[#allocation2 + $0x8] sm:$0xff]
    %v46 = vpack.c.bf16 %v45, %v44
    %v47 = vld [vmem:[#allocation5] sm:$0xf]
    %v48 = vld [vmem:[#allocation5 + $0x4] sm:$0xf]
    %v49 = vld [vmem:[#allocation5 + $0x8] sm:$0xf]
    %v50 = vld [vmem:[#allocation5 + $0xc] sm:$0xf]
    %v51 = vld [vmem:[#allocation5 + $0x10] sm:$0xf]
    %v52 = vld [vmem:[#allocation5 + $0x14] sm:$0xf]
    %v53 = vld [vmem:[#allocation5 + $0x18] sm:$0xf]
    %v54 = vld [vmem:[#allocation5 + $0x1c] sm:$0xf]
    %v55 = vld [vmem:[#allocation5 + $0x20] sm:$0xf]
    %v56 = vld [vmem:[#allocation5 + $0x24] sm:$0xf]
    %v57 = vld [vmem:[#allocation5 + $0x28] sm:$0xf]
    %v58 = vld [vmem:[#allocation5 + $0x2c] sm:$0xf]
    %v59 = vld [vmem:[#allocation5 + $0x30] sm:$0xf]
    %v60 = vld [vmem:[#allocation5 + $0x34] sm:$0xf]
    %v61 = vld [vmem:[#allocation5 + $0x38] sm:$0xf]
    %v62 = vld [vmem:[#allocation5 + $0x3c] sm:$0xf]
    %v63 = vld [vmem:[%s2] sm:$0x1]
    %v65 = vlaneseq
    %v66 = vshrl.u32 %v65, 7
    %v67 = vsub.s32 0, %v66
    %v68 = vrot.slane %v63, %v67
    %v86 = vunpack.c.l.b16 %v47
    %v87 = vunpack.c.l.b16 %v48
    %v88 = vunpack.c.l.b16 %v49
    %v89 = vunpack.c.l.b16 %v50
    %v90 = vunpack.c.l.b16 %v51
    %v91 = vunpack.c.l.b16 %v52
    %v92 = vunpack.c.l.b16 %v53
    %v93 = vunpack.c.l.b16 %v54
    %v94 = vunpack.c.l.b16 %v55
    %v95 = vunpack.c.l.b16 %v56
    %v96 = vunpack.c.l.b16 %v57
    %v97 = vunpack.c.l.b16 %v58
    %v98 = vunpack.c.l.b16 %v59
    %v99 = vunpack.c.l.b16 %v60
    %v100 = vunpack.c.l.b16 %v61
    %v101 = vunpack.c.l.b16 %v62
    %v102 = vpack.c.b16 %v87, %v86
    %v103 = vpack.c.b16 %v89, %v88
    %v104 = vpack.c.b16 %v91, %v90
    %v105 = vpack.c.b16 %v93, %v92
    %v106 = vpack.c.b16 %v95, %v94
    %v107 = vpack.c.b16 %v97, %v96
    %v108 = vpack.c.b16 %v99, %v98
    %v109 = vpack.c.b16 %v101, %v100
    %118 = vmatprep.subr.bf16.mxu0 0
    %119 = vmatpush1.bf16.msra.mxu0 %v102
    %120 = vmatprep.subr.bf16.mxu0 0
    %121 = vmatpush1.bf16.msra.mxu0 %v103
    %122 = vmatprep.subr.bf16.mxu0 0
    %123 = vmatpush1.bf16.msra.mxu0 %v104
    %124 = vmatprep.subr.bf16.mxu0 0
    %125 = vmatpush1.bf16.msra.mxu0 %v105
    %126 = vmatprep.subr.bf16.mxu0 0
    %127 = vmatpush1.bf16.msra.mxu0 %v106
    %128 = vmatprep.subr.bf16.mxu0 0
    %129 = vmatpush1.bf16.msra.mxu0 %v107
    %130 = vmatprep.subr.bf16.mxu0 0
    %131 = vmatpush1.bf16.msra.mxu0 %v108
    %132 = vmatprep.subr.bf16.mxu0 0
    %133 = vmatpush1.bf16.msra.mxu0 %v109
    %134 = vmatprep.subr.bf16.mxu0 0
    %135 = vmatpush1.bf16.msra.mxu0 0
    %136 = vmatprep.subr.bf16.mxu0 0
    %137 = vmatpush1.bf16.msra.mxu0 0
    %138 = vmatprep.subr.bf16.mxu0 0
    %139 = vmatpush1.bf16.msra.mxu0 0
    %140 = vmatprep.subr.bf16.mxu0 0
    %141 = vmatpush1.bf16.msra.mxu0 0
    %142 = vmatprep.subr.bf16.mxu0 0
    %143 = vmatpush1.bf16.msra.mxu0 0
    %144 = vmatprep.subr.bf16.mxu0 0
    %145 = vmatpush1.bf16.msra.mxu0 0
    %146 = vmatprep.subr.bf16.mxu0 0
    %147 = vmatpush1.bf16.msra.mxu0 0
    %148 = vmatprep.subr.bf16.mxu0 0
    %149 = vmatpush1.bf16.msra.mxu0 0
    %150 = vmatprep.mubr.bf16.mxu0 0
    %151 = vmatmul.mubr.bf16.gmra.mrb[0].mxu0 %v46
    %v152 = vpop.f32.mrb[0].mxu0
    %v153 = vadd.f32 %v68, %v152
    %v154 = vpop.f32.mrb[0].mxu0
    %v155 = vpop.f32.mrb[0].mxu0
    %v156 = vadd.f32 %v68, %v155
    %v157 = vpop.f32.mrb[0].mxu0
    %158 = vdwg.mxu0
    %v159 = vmax.f32 %v153, 0.0
    %v160 = vmax.f32 %v156, 0.0
    %v161 = vpack.c.bf16 %v160, %v159
    %s162 = scalar_lea.vmem [#allocation5], 64
    %v163 = vld [vmem:[%s162] sm:$0xf]
    %v164 = vld [vmem:[%s162 + $0x4] sm:$0xf]
    %v165 = vld [vmem:[%s162 + $0x8] sm:$0xf]
    %v166 = vld [vmem:[%s162 + $0xc] sm:$0xf]
    %v167 = vld [vmem:[%s162 + $0x10] sm:$0xf]
    %v168 = vld [vmem:[%s162 + $0x14] sm:$0xf]
    %v169 = vld [vmem:[%s162 + $0x18] sm:$0xf]
    %v170 = vld [vmem:[%s162 + $0x1c] sm:$0xf]
    %v171 = vld [vmem:[%s162 + $0x20] sm:$0xf]
    %v172 = vld [vmem:[%s162 + $0x24] sm:$0xf]
    %v173 = vld [vmem:[%s162 + $0x28] sm:$0xf]
    %v174 = vld [vmem:[%s162 + $0x2c] sm:$0xf]
    %v175 = vld [vmem:[%s162 + $0x30] sm:$0xf]
    %v176 = vld [vmem:[%s162 + $0x34] sm:$0xf]
    %v177 = vld [vmem:[%s162 + $0x38] sm:$0xf]
    %v178 = vld [vmem:[%s162 + $0x3c] sm:$0xf]
    %s179 = scalar_lea.vmem %s2, 1
    %v180 = vld [vmem:[%s179] sm:$0x1]
    %v182 = vlaneseq
    %v183 = vshrl.u32 %v182, 7
    %v184 = vsub.s32 0, %v183
    %v185 = vrot.slane %v180, %v184
    %v203 = vunpack.c.l.b16 %v163
    %v204 = vunpack.c.l.b16 %v164
    %v205 = vunpack.c.l.b16 %v165
    %v206 = vunpack.c.l.b16 %v166
    %v207 = vunpack.c.l.b16 %v167
    %v208 = vunpack.c.l.b16 %v168
    %v209 = vunpack.c.l.b16 %v169
    %v210 = vunpack.c.l.b16 %v170
    %v211 = vunpack.c.l.b16 %v171
    %v212 = vunpack.c.l.b16 %v172
    %v213 = vunpack.c.l.b16 %v173
    %v214 = vunpack.c.l.b16 %v174
    %v215 = vunpack.c.l.b16 %v175
    %v216 = vunpack.c.l.b16 %v176
    %v217 = vunpack.c.l.b16 %v177
    %v218 = vunpack.c.l.b16 %v178
    %v219 = vpack.c.b16 %v204, %v203
    %v220 = vpack.c.b16 %v206, %v205
    %v221 = vpack.c.b16 %v208, %v207
    %v222 = vpack.c.b16 %v210, %v209
    %v223 = vpack.c.b16 %v212, %v211
    %v224 = vpack.c.b16 %v214, %v213
    %v225 = vpack.c.b16 %v216, %v215
    %v226 = vpack.c.b16 %v218, %v217
    %235 = vmatprep.subr.bf16.mxu0 0
    %236 = vmatpush1.bf16.msra.mxu0 %v219
    %237 = vmatprep.subr.bf16.mxu0 0
    %238 = vmatpush1.bf16.msra.mxu0 %v220
    %239 = vmatprep.subr.bf16.mxu0 0
    %240 = vmatpush1.bf16.msra.mxu0 %v221
    %241 = vmatprep.subr.bf16.mxu0 0
    %242 = vmatpush1.bf16.msra.mxu0 %v222
    %243 = vmatprep.subr.bf16.mxu0 0
    %244 = vmatpush1.bf16.msra.mxu0 %v223
    %245 = vmatprep.subr.bf16.mxu0 0
    %246 = vmatpush1.bf16.msra.mxu0 %v224
    %247 = vmatprep.subr.bf16.mxu0 0
    %248 = vmatpush1.bf16.msra.mxu0 %v225
    %249 = vmatprep.subr.bf16.mxu0 0
    %250 = vmatpush1.bf16.msra.mxu0 %v226
    %251 = vmatprep.subr.bf16.mxu0 0
    %252 = vmatpush1.bf16.msra.mxu0 0
    %253 = vmatprep.subr.bf16.mxu0 0
    %254 = vmatpush1.bf16.msra.mxu0 0
    %255 = vmatprep.subr.bf16.mxu0 0
    %256 = vmatpush1.bf16.msra.mxu0 0
    %257 = vmatprep.subr.bf16.mxu0 0
    %258 = vmatpush1.bf16.msra.mxu0 0
    %259 = vmatprep.subr.bf16.mxu0 0
    %260 = vmatpush1.bf16.msra.mxu0 0
    %261 = vmatprep.subr.bf16.mxu0 0
    %262 = vmatpush1.bf16.msra.mxu0 0
    %263 = vmatprep.subr.bf16.mxu0 0
    %264 = vmatpush1.bf16.msra.mxu0 0
    %265 = vmatprep.subr.bf16.mxu0 0
    %266 = vmatpush1.bf16.msra.mxu0 0
    %267 = vmatprep.mubr.bf16.mxu0 0
    %268 = vmatmul.mubr.bf16.gmra.mrb[0].mxu0 %v161
    %v269 = vpop.f32.mrb[0].mxu0
    %v270 = vadd.f32 %v185, %v269
    %v271 = vpop.f32.mrb[0].mxu0
    %v272 = vpop.f32.mrb[0].mxu0
    %v273 = vadd.f32 %v185, %v272
    %v274 = vpop.f32.mrb[0].mxu0
    %275 = vdwg.mxu0
    %v276 = vmax.f32 %v270, 0.0
    %v277 = vmax.f32 %v273, 0.0
    %v278 = vpack.c.bf16 %v277, %v276
    %s279 = scalar_lea.vmem [#allocation5], 128
    %v280 = vld [vmem:[%s279] sm:$0xf]
    %v281 = vld [vmem:[%s279 + $0x4] sm:$0xf]
    %v282 = vld [vmem:[%s279 + $0x8] sm:$0xf]
    %v283 = vld [vmem:[%s279 + $0xc] sm:$0xf]
    %v284 = vld [vmem:[%s279 + $0x10] sm:$0xf]
    %v285 = vld [vmem:[%s279 + $0x14] sm:$0xf]
    %v286 = vld [vmem:[%s279 + $0x18] sm:$0xf]
    %v287 = vld [vmem:[%s279 + $0x1c] sm:$0xf]
    %v288 = vld [vmem:[%s279 + $0x20] sm:$0xf]
    %v289 = vld [vmem:[%s279 + $0x24] sm:$0xf]
    %v290 = vld [vmem:[%s279 + $0x28] sm:$0xf]
    %v291 = vld [vmem:[%s279 + $0x2c] sm:$0xf]
    %v292 = vld [vmem:[%s279 + $0x30] sm:$0xf]
    %v293 = vld [vmem:[%s279 + $0x34] sm:$0xf]
    %v294 = vld [vmem:[%s279 + $0x38] sm:$0xf]
    %v295 = vld [vmem:[%s279 + $0x3c] sm:$0xf]
    %s296 = scalar_lea.vmem %s2, 2
    %v297 = vld [vmem:[%s296] sm:$0x1]
    %v299 = vlaneseq
    %v300 = vshrl.u32 %v299, 7
    %v301 = vsub.s32 0, %v300
    %v302 = vrot.slane %v297, %v301
    %v320 = vunpack.c.l.b16 %v280
    %v321 = vunpack.c.l.b16 %v281
    %v322 = vunpack.c.l.b16 %v282
    %v323 = vunpack.c.l.b16 %v283
    %v324 = vunpack.c.l.b16 %v284
    %v325 = vunpack.c.l.b16 %v285
    %v326 = vunpack.c.l.b16 %v286
    %v327 = vunpack.c.l.b16 %v287
    %v328 = vunpack.c.l.b16 %v288
    %v329 = vunpack.c.l.b16 %v289
    %v330 = vunpack.c.l.b16 %v290
    %v331 = vunpack.c.l.b16 %v291
    %v332 = vunpack.c.l.b16 %v292
    %v333 = vunpack.c.l.b16 %v293
    %v334 = vunpack.c.l.b16 %v294
    %v335 = vunpack.c.l.b16 %v295
    %v336 = vpack.c.b16 %v321, %v320
    %v337 = vpack.c.b16 %v323, %v322
    %v338 = vpack.c.b16 %v325, %v324
    %v339 = vpack.c.b16 %v327, %v326
    %v340 = vpack.c.b16 %v329, %v328
    %v341 = vpack.c.b16 %v331, %v330
    %v342 = vpack.c.b16 %v333, %v332
    %v343 = vpack.c.b16 %v335, %v334
    %352 = vmatprep.subr.bf16.mxu0 0
    %353 = vmatpush1.bf16.msra.mxu0 %v336
    %354 = vmatprep.subr.bf16.mxu0 0
    %355 = vmatpush1.bf16.msra.mxu0 %v337
    %356 = vmatprep.subr.bf16.mxu0 0
    %357 = vmatpush1.bf16.msra.mxu0 %v338
    %358 = vmatprep.subr.bf16.mxu0 0
    %359 = vmatpush1.bf16.msra.mxu0 %v339
    %360 = vmatprep.subr.bf16.mxu0 0
    %361 = vmatpush1.bf16.msra.mxu0 %v340
    %362 = vmatprep.subr.bf16.mxu0 0
    %363 = vmatpush1.bf16.msra.mxu0 %v341
    %364 = vmatprep.subr.bf16.mxu0 0
    %365 = vmatpush1.bf16.msra.mxu0 %v342
    %366 = vmatprep.subr.bf16.mxu0 0
    %367 = vmatpush1.bf16.msra.mxu0 %v343
    %368 = vmatprep.subr.bf16.mxu0 0
    %369 = vmatpush1.bf16.msra.mxu0 0
    %370 = vmatprep.subr.bf16.mxu0 0
    %371 = vmatpush1.bf16.msra.mxu0 0
    %372 = vmatprep.subr.bf16.mxu0 0
    %373 = vmatpush1.bf16.msra.mxu0 0
    %374 = vmatprep.subr.bf16.mxu0 0
    %375 = vmatpush1.bf16.msra.mxu0 0
    %376 = vmatprep.subr.bf16.mxu0 0
    %377 = vmatpush1.bf16.msra.mxu0 0
    %378 = vmatprep.subr.bf16.mxu0 0
    %379 = vmatpush1.bf16.msra.mxu0 0
    %380 = vmatprep.subr.bf16.mxu0 0
    %381 = vmatpush1.bf16.msra.mxu0 0
    %382 = vmatprep.subr.bf16.mxu0 0
    %383 = vmatpush1.bf16.msra.mxu0 0
    %384 = vmatprep.mubr.bf16.mxu0 0
    %385 = vmatmul.mubr.bf16.gmra.mrb[0].mxu0 %v278
    %v386 = vpop.f32.mrb[0].mxu0
    %v387 = vadd.f32 %v302, %v386
    %v388 = vpop.f32.mrb[0].mxu0
    %v389 = vpop.f32.mrb[0].mxu0
    %v390 = vadd.f32 %v302, %v389
    %v391 = vpop.f32.mrb[0].mxu0
    %392 = vdwg.mxu0
    %v393 = vtanh.pop %v387
    %v394 = vtanh.pop %v390
    %v395 = vpack.c.bf16 %v394, %v393
    %s396 = scalar_lea.vmem [#allocation5], 192
    %v397 = vld [vmem:[%s396] sm:$0xf]
    %v398 = vld [vmem:[%s396 + $0x4] sm:$0xf]
    %v399 = vld [vmem:[%s396 + $0x8] sm:$0xf]
    %v400 = vld [vmem:[%s396 + $0xc] sm:$0xf]
    %v401 = vld [vmem:[%s396 + $0x10] sm:$0xf]
    %v402 = vld [vmem:[%s396 + $0x14] sm:$0xf]
    %v403 = vld [vmem:[%s396 + $0x18] sm:$0xf]
    %v404 = vld [vmem:[%s396 + $0x1c] sm:$0xf]
    %v405 = vld [vmem:[%s396 + $0x20] sm:$0xf]
    %v406 = vld [vmem:[%s396 + $0x24] sm:$0xf]
    %v407 = vld [vmem:[%s396 + $0x28] sm:$0xf]
    %v408 = vld [vmem:[%s396 + $0x2c] sm:$0xf]
    %v409 = vld [vmem:[%s396 + $0x30] sm:$0xf]
    %v410 = vld [vmem:[%s396 + $0x34] sm:$0xf]
    %v411 = vld [vmem:[%s396 + $0x38] sm:$0xf]
    %v412 = vld [vmem:[%s396 + $0x3c] sm:$0xf]
    %s413 = scalar_lea.vmem %s2, 3
    %v414 = vld [vmem:[%s413] sm:$0x1]
    %v416 = vlaneseq
    %v417 = vshrl.u32 %v416, 7
    %v418 = vsub.s32 0, %v417
    %v419 = vrot.slane %v414, %v418
    %v437 = vunpack.c.l.b16 %v397
    %v438 = vunpack.c.l.b16 %v398
    %v439 = vunpack.c.l.b16 %v399
    %v440 = vunpack.c.l.b16 %v400
    %v441 = vunpack.c.l.b16 %v401
    %v442 = vunpack.c.l.b16 %v402
    %v443 = vunpack.c.l.b16 %v403
    %v444 = vunpack.c.l.b16 %v404
    %v445 = vunpack.c.l.b16 %v405
    %v446 = vunpack.c.l.b16 %v406
    %v447 = vunpack.c.l.b16 %v407
    %v448 = vunpack.c.l.b16 %v408
    %v449 = vunpack.c.l.b16 %v409
    %v450 = vunpack.c.l.b16 %v410
    %v451 = vunpack.c.l.b16 %v411
    %v452 = vunpack.c.l.b16 %v412
    %v453 = vpack.c.b16 %v438, %v437
    %v454 = vpack.c.b16 %v440, %v439
    %v455 = vpack.c.b16 %v442, %v441
    %v456 = vpack.c.b16 %v444, %v443
    %v457 = vpack.c.b16 %v446, %v445
    %v458 = vpack.c.b16 %v448, %v447
    %v459 = vpack.c.b16 %v450, %v449
    %v460 = vpack.c.b16 %v452, %v451
    %469 = vmatprep.subr.bf16.mxu0 0
    %470 = vmatpush1.bf16.msra.mxu0 %v453
    %471 = vmatprep.subr.bf16.mxu0 0
    %472 = vmatpush1.bf16.msra.mxu0 %v454
    %473 = vmatprep.subr.bf16.mxu0 0
    %474 = vmatpush1.bf16.msra.mxu0 %v455
    %475 = vmatprep.subr.bf16.mxu0 0
    %476 = vmatpush1.bf16.msra.mxu0 %v456
    %477 = vmatprep.subr.bf16.mxu0 0
    %478 = vmatpush1.bf16.msra.mxu0 %v457
    %479 = vmatprep.subr.bf16.mxu0 0
    %480 = vmatpush1.bf16.msra.mxu0 %v458
    %481 = vmatprep.subr.bf16.mxu0 0
    %482 = vmatpush1.bf16.msra.mxu0 %v459
    %483 = vmatprep.subr.bf16.mxu0 0
    %484 = vmatpush1.bf16.msra.mxu0 %v460
    %485 = vmatprep.subr.bf16.mxu0 0
    %486 = vmatpush1.bf16.msra.mxu0 0
    %487 = vmatprep.subr.bf16.mxu0 0
    %488 = vmatpush1.bf16.msra.mxu0 0
    %489 = vmatprep.subr.bf16.mxu0 0
    %490 = vmatpush1.bf16.msra.mxu0 0
    %491 = vmatprep.subr.bf16.mxu0 0
    %492 = vmatpush1.bf16.msra.mxu0 0
    %493 = vmatprep.subr.bf16.mxu0 0
    %494 = vmatpush1.bf16.msra.mxu0 0
    %495 = vmatprep.subr.bf16.mxu0 0
    %496 = vmatpush1.bf16.msra.mxu0 0
    %497 = vmatprep.subr.bf16.mxu0 0
    %498 = vmatpush1.bf16.msra.mxu0 0
    %499 = vmatprep.subr.bf16.mxu0 0
    %500 = vmatpush1.bf16.msra.mxu0 0
    %501 = vmatprep.mubr.bf16.mxu0 0
    %502 = vmatmul.mubr.bf16.gmra.mrb[0].mxu0 %v395
    %v503 = vpop.f32.mrb[0].mxu0
    %v504 = vadd.f32 %v419, %v503
    %v505 = vpop.f32.mrb[0].mxu0
    %v506 = vpop.f32.mrb[0].mxu0
    %v507 = vadd.f32 %v419, %v506
    %v508 = vpop.f32.mrb[0].mxu0
    %509 = vdwg.mxu0
    %v510 = vmax.f32 %v504, 0.0
    %v511 = vmax.f32 %v507, 0.0
    %v512 = vpack.c.bf16 %v511, %v510
    %s513 = scalar_lea.vmem [#allocation5], 256
    %v514 = vld [vmem:[%s513] sm:$0xf]
    %v515 = vld [vmem:[%s513 + $0x4] sm:$0xf]
    %v516 = vld [vmem:[%s513 + $0x8] sm:$0xf]
    %v517 = vld [vmem:[%s513 + $0xc] sm:$0xf]
    %v518 = vld [vmem:[%s513 + $0x10] sm:$0xf]
    %v519 = vld [vmem:[%s513 + $0x14] sm:$0xf]
    %v520 = vld [vmem:[%s513 + $0x18] sm:$0xf]
    %v521 = vld [vmem:[%s513 + $0x1c] sm:$0xf]
    %v522 = vld [vmem:[%s513 + $0x20] sm:$0xf]
    %v523 = vld [vmem:[%s513 + $0x24] sm:$0xf]
    %v524 = vld [vmem:[%s513 + $0x28] sm:$0xf]
    %v525 = vld [vmem:[%s513 + $0x2c] sm:$0xf]
    %v526 = vld [vmem:[%s513 + $0x30] sm:$0xf]
    %v527 = vld [vmem:[%s513 + $0x34] sm:$0xf]
    %v528 = vld [vmem:[%s513 + $0x38] sm:$0xf]
    %v529 = vld [vmem:[%s513 + $0x3c] sm:$0xf]
    %s530 = scalar_lea.vmem %s2, 4
    %v531 = vld [vmem:[%s530] sm:$0x1]
    %v533 = vlaneseq
    %v534 = vshrl.u32 %v533, 7
    %v535 = vsub.s32 0, %v534
    %v536 = vrot.slane %v531, %v535
    %v554 = vunpack.c.l.b16 %v514
    %v555 = vunpack.c.l.b16 %v515
    %v556 = vunpack.c.l.b16 %v516
    %v557 = vunpack.c.l.b16 %v517
    %v558 = vunpack.c.l.b16 %v518
    %v559 = vunpack.c.l.b16 %v519
    %v560 = vunpack.c.l.b16 %v520
    %v561 = vunpack.c.l.b16 %v521
    %v562 = vunpack.c.l.b16 %v522
    %v563 = vunpack.c.l.b16 %v523
    %v564 = vunpack.c.l.b16 %v524
    %v565 = vunpack.c.l.b16 %v525
    %v566 = vunpack.c.l.b16 %v526
    %v567 = vunpack.c.l.b16 %v527
    %v568 = vunpack.c.l.b16 %v528
    %v569 = vunpack.c.l.b16 %v529
    %v570 = vpack.c.b16 %v555, %v554
    %v571 = vpack.c.b16 %v557, %v556
    %v572 = vpack.c.b16 %v559, %v558
    %v573 = vpack.c.b16 %v561, %v560
    %v574 = vpack.c.b16 %v563, %v562
    %v575 = vpack.c.b16 %v565, %v564
    %v576 = vpack.c.b16 %v567, %v566
    %v577 = vpack.c.b16 %v569, %v568
    %586 = vmatprep.subr.bf16.mxu0 0
    %587 = vmatpush1.bf16.msra.mxu0 %v570
    %588 = vmatprep.subr.bf16.mxu0 0
    %589 = vmatpush1.bf16.msra.mxu0 %v571
    %590 = vmatprep.subr.bf16.mxu0 0
    %591 = vmatpush1.bf16.msra.mxu0 %v572
    %592 = vmatprep.subr.bf16.mxu0 0
    %593 = vmatpush1.bf16.msra.mxu0 %v573
    %594 = vmatprep.subr.bf16.mxu0 0
    %595 = vmatpush1.bf16.msra.mxu0 %v574
    %596 = vmatprep.subr.bf16.mxu0 0
    %597 = vmatpush1.bf16.msra.mxu0 %v575
    %598 = vmatprep.subr.bf16.mxu0 0
    %599 = vmatpush1.bf16.msra.mxu0 %v576
    %600 = vmatprep.subr.bf16.mxu0 0
    %601 = vmatpush1.bf16.msra.mxu0 %v577
    %602 = vmatprep.subr.bf16.mxu0 0
    %603 = vmatpush1.bf16.msra.mxu0 0
    %604 = vmatprep.subr.bf16.mxu0 0
    %605 = vmatpush1.bf16.msra.mxu0 0
    %606 = vmatprep.subr.bf16.mxu0 0
    %607 = vmatpush1.bf16.msra.mxu0 0
    %608 = vmatprep.subr.bf16.mxu0 0
    %609 = vmatpush1.bf16.msra.mxu0 0
    %610 = vmatprep.subr.bf16.mxu0 0
    %611 = vmatpush1.bf16.msra.mxu0 0
    %612 = vmatprep.subr.bf16.mxu0 0
    %613 = vmatpush1.bf16.msra.mxu0 0
    %614 = vmatprep.subr.bf16.mxu0 0
    %615 = vmatpush1.bf16.msra.mxu0 0
    %616 = vmatprep.subr.bf16.mxu0 0
    %617 = vmatpush1.bf16.msra.mxu0 0
    %618 = vmatprep.mubr.bf16.mxu0 0
    %619 = vmatmul.mubr.bf16.gmra.mrb[0].mxu0 %v512
    %v620 = vpop.f32.mrb[0].mxu0
    %v621 = vadd.f32 %v536, %v620
    %v622 = vpop.f32.mrb[0].mxu0
    %v623 = vpop.f32.mrb[0].mxu0
    %v624 = vadd.f32 %v536, %v623
    %v625 = vpop.f32.mrb[0].mxu0
    %626 = vdwg.mxu0
    %v627 = vmax.f32 %v621, 0.0
    %v628 = vmax.f32 %v624, 0.0
    %v629 = vpack.c.bf16 %v628, %v627
    %s630 = scalar_lea.vmem [#allocation5], 320
    %v631 = vld [vmem:[%s630] sm:$0xf]
    %v632 = vld [vmem:[%s630 + $0x4] sm:$0xf]
    %v633 = vld [vmem:[%s630 + $0x8] sm:$0xf]
    %v634 = vld [vmem:[%s630 + $0xc] sm:$0xf]
    %v635 = vld [vmem:[%s630 + $0x10] sm:$0xf]
    %v636 = vld [vmem:[%s630 + $0x14] sm:$0xf]
    %v637 = vld [vmem:[%s630 + $0x18] sm:$0xf]
    %v638 = vld [vmem:[%s630 + $0x1c] sm:$0xf]
    %v639 = vld [vmem:[%s630 + $0x20] sm:$0xf]
    %v640 = vld [vmem:[%s630 + $0x24] sm:$0xf]
    %v641 = vld [vmem:[%s630 + $0x28] sm:$0xf]
    %v642 = vld [vmem:[%s630 + $0x2c] sm:$0xf]
    %v643 = vld [vmem:[%s630 + $0x30] sm:$0xf]
    %v644 = vld [vmem:[%s630 + $0x34] sm:$0xf]
    %v645 = vld [vmem:[%s630 + $0x38] sm:$0xf]
    %v646 = vld [vmem:[%s630 + $0x3c] sm:$0xf]
    %s647 = scalar_lea.vmem %s2, 5
    %v648 = vld [vmem:[%s647] sm:$0x1]
    %v650 = vlaneseq
    %v651 = vshrl.u32 %v650, 7
    %v652 = vsub.s32 0, %v651
    %v653 = vrot.slane %v648, %v652
    %v671 = vunpack.c.l.b16 %v631
    %v672 = vunpack.c.l.b16 %v632
    %v673 = vunpack.c.l.b16 %v633
    %v674 = vunpack.c.l.b16 %v634
    %v675 = vunpack.c.l.b16 %v635
    %v676 = vunpack.c.l.b16 %v636
    %v677 = vunpack.c.l.b16 %v637
    %v678 = vunpack.c.l.b16 %v638
    %v679 = vunpack.c.l.b16 %v639
    %v680 = vunpack.c.l.b16 %v640
    %v681 = vunpack.c.l.b16 %v641
    %v682 = vunpack.c.l.b16 %v642
    %v683 = vunpack.c.l.b16 %v643
    %v684 = vunpack.c.l.b16 %v644
    %v685 = vunpack.c.l.b16 %v645
    %v686 = vunpack.c.l.b16 %v646
    %v687 = vpack.c.b16 %v672, %v671
    %v688 = vpack.c.b16 %v674, %v673
    %v689 = vpack.c.b16 %v676, %v675
    %v690 = vpack.c.b16 %v678, %v677
    %v691 = vpack.c.b16 %v680, %v679
    %v692 = vpack.c.b16 %v682, %v681
    %v693 = vpack.c.b16 %v684, %v683
    %v694 = vpack.c.b16 %v686, %v685
    %703 = vmatprep.subr.bf16.mxu0 0
    %704 = vmatpush1.bf16.msra.mxu0 %v687
    %705 = vmatprep.subr.bf16.mxu0 0
    %706 = vmatpush1.bf16.msra.mxu0 %v688
    %707 = vmatprep.subr.bf16.mxu0 0
    %708 = vmatpush1.bf16.msra.mxu0 %v689
    %709 = vmatprep.subr.bf16.mxu0 0
    %710 = vmatpush1.bf16.msra.mxu0 %v690
    %711 = vmatprep.subr.bf16.mxu0 0
    %712 = vmatpush1.bf16.msra.mxu0 %v691
    %713 = vmatprep.subr.bf16.mxu0 0
    %714 = vmatpush1.bf16.msra.mxu0 %v692
    %715 = vmatprep.subr.bf16.mxu0 0
    %716 = vmatpush1.bf16.msra.mxu0 %v693
    %717 = vmatprep.subr.bf16.mxu0 0
    %718 = vmatpush1.bf16.msra.mxu0 %v694
    %719 = vmatprep.subr.bf16.mxu0 0
    %720 = vmatpush1.bf16.msra.mxu0 0
    %721 = vmatprep.subr.bf16.mxu0 0
    %722 = vmatpush1.bf16.msra.mxu0 0
    %723 = vmatprep.subr.bf16.mxu0 0
    %724 = vmatpush1.bf16.msra.mxu0 0
    %725 = vmatprep.subr.bf16.mxu0 0
    %726 = vmatpush1.bf16.msra.mxu0 0
    %727 = vmatprep.subr.bf16.mxu0 0
    %728 = vmatpush1.bf16.msra.mxu0 0
    %729 = vmatprep.subr.bf16.mxu0 0
    %730 = vmatpush1.bf16.msra.mxu0 0
    %731 = vmatprep.subr.bf16.mxu0 0
    %732 = vmatpush1.bf16.msra.mxu0 0
    %733 = vmatprep.subr.bf16.mxu0 0
    %734 = vmatpush1.bf16.msra.mxu0 0
    %735 = vmatprep.mubr.bf16.mxu0 0
    %736 = vmatmul.mubr.bf16.gmra.mrb[0].mxu0 %v629
    %v737 = vpop.f32.mrb[0].mxu0
    %v738 = vadd.f32 %v653, %v737
    %v739 = vpop.f32.mrb[0].mxu0
    %v740 = vpop.f32.mrb[0].mxu0
    %v741 = vadd.f32 %v653, %v740
    %v742 = vpop.f32.mrb[0].mxu0
    %743 = vdwg.mxu0
    %v744 = vmax.f32 %v738, 0.0
    %v745 = vmax.f32 %v741, 0.0
    %746 = vst [vmem:[#allocation7] sm:$0xff] %v744
    %747 = vst [vmem:[#allocation7 + $0x8] sm:$0xff] %v745
    // Predicated region
    $region22: #{tpu_custom_call.1} parent=1 // pred_check
      _
    $region23: #{tpu_custom_call.1} parent=1 // pred_check_branch
      %749 = sbr.rel (0) target = $region25
    $region24: #{tpu_custom_call.1} parent=1 // pred_region
      %s751 = ssub.s32 256, 256
      %752 = vsyncadd [#allocation4], %s751
      %s753 = sshll.u32 [#allocation7], 4
      %s754 = int_to_ptr.vmem [resolvable:$true] %s753
      %759 = dma.vmem_to_hbm [thread:$0]  %s754, 256, %s3, [#allocation4], 128, 128, 8
    $region25: #{tpu_custom_call.1} parent=1 // pred_fallthru
      _
    // Predicated region
    $region26: #{tpu_custom_call.1} parent=1 // pred_check
      _
    $region27: #{tpu_custom_call.1} parent=1 // pred_check_branch
      %761 = sbr.rel (0) target = $region29
    $region28: #{tpu_custom_call.1} parent=1 // pred_region
      %762 = dma.done [#allocation4], 256
    $region29: #{tpu_custom_call.1} parent=1 // pred_fallthru
      _
    %763 = vsyncpa [#allocation3], 1
    %764 = vsyncpa [#allocation6], 1
    %765 = vsyncpa [#allocation4], 1

</llo_original>
